<compile_context>
chip_gen: v7x
topology: tpu7x:2x2x1
jax: 0.10.0
libtpu: 0.0.40
codegen_flags: <defaults>
</compile_context>

<pallas_src>
import functools

import jax
import jax.numpy as jnp
from jax.experimental import pallas as pl
from jax.experimental.pallas import tpu as pltpu


def _f1_ce_kernel(y_pred_ref, y_true_ref, out_ref, acc_ref,
                  *, epsilon, n_true, m_rows):
    step = pl.program_id(0)

    # ---- init the single-vreg accumulator on the first tile -----------------
    @pl.when(step == 0)
    def _init():
        acc_ref[...] = jnp.zeros_like(acc_ref)

    # ---- per-tile streaming accumulation (fully packed (tm, 128) slabs) -----
    tm = y_pred_ref.shape[1]
    x0 = y_pred_ref[0].astype(jnp.float32)        # (tm, 128) class-0 logits
    x1 = y_pred_ref[1].astype(jnp.float32)        # (tm, 128) class-1 logits
    y0 = y_true_ref[0]                            # (tm, 128) int32 labels (-1 = lane pad)

    # Global-row validity mask: the last grid step may read past the real M rows.
    row = jax.lax.broadcasted_iota(jnp.int32, (tm, 128), 0)
    valid = (step * tm + row) < m_rows

    # jnp.where (not multiply) so Inf/NaN garbage in out-of-bounds rows cannot
    # poison the sums via 0 * Inf.
    x0 = jnp.where(valid, x0, 0.0)
    x1 = jnp.where(valid, x1, 0.0)
    m0 = jnp.where(valid & (y0 == 0), 1.0, 0.0)   # label==0 samples
    m1 = jnp.where(valid & (y0 == 1), 1.0, 0.0)   # label==1 samples

    # -log_softmax at the true class == softplus(logit_other - logit_true), stable.
    d = x1 - x0
    s = jnp.where(y0 == 0, d, -d)
    nll = jnp.maximum(s, 0.0) + jnp.log1p(jnp.exp(-jnp.abs(s)))

    def _rsum(a):                                  # sublane reduce -> (1, 128)
        return jnp.sum(a, axis=0, keepdims=True)

    partial = jnp.concatenate([
        _rsum(m0 * x0),     # tp0
        _rsum(m1 * x1),     # tp1
        _rsum(x0),          # colsum0 (pads / invalid rows are exactly 0)
        _rsum(x1),          # colsum1
        _rsum(m0),          # cnt0
        _rsum(m1),          # cnt1
        _rsum(m0 * nll),    # nll0
        _rsum(m1 * nll),    # nll1
    ], axis=0)                                     # (8, 128) == one vreg
    acc_ref[...] += partial

    # ---- finalize: F1 weights + weighted CE mean on the last tile -----------
    @pl.when(step == pl.num_programs(0) - 1)
    def _finalize():
        eps = jnp.float32(epsilon)
        totals = jnp.sum(acc_ref[...], axis=1, keepdims=True)    # (8, 1) lane reduce
        tp, cs, cnt, nll_c = totals[0:2], totals[2:4], totals[4:6], totals[6:8]

        fp = cs - tp        # == sum((1 - one_hot) * y_pred)
        fn = cnt - tp       # == sum(one_hot * (1 - y_pred))
        precision = tp / (tp + fp + eps)
        recall = tp / (tp + fn + eps)
        f1 = 2.0 * precision * recall / (precision + recall + eps)
        f1 = jnp.clip(f1, eps, 1.0 - eps)          # .detach() is a forward no-op
        w = 1.0 - f1                               # (2, 1) class weights

        # CrossEntropyLoss(weight=w) with one-hot soft targets, reduction='mean':
        #   loss = (1/N) * sum_n w_{y_n} * (-log_softmax(x_n)[y_n]) = (w . nll) / N
        out_ref[...] = jnp.sum(w * nll_c, axis=0, keepdims=True) / jnp.float32(n_true)


def f1_ce_loss(y_pred, y_true, epsilon=1e-7, block_rows=4096):
    """y_pred: (N, 2) logits (f32 or bf16); y_true: (N,) int labels. Returns f32 scalar."""
    n, c = y_pred.shape
    assert c == 2, "F1_Loss is defined for 2 classes"

    # TODO(synk): produce class-major (2, N) logits upstream (fuse the transpose into
    # the matmul that emits the logits) to drop this extra HBM pass.
    x = jnp.transpose(y_pred)                         # (2, N), dtype preserved (bf16 ok)
    y = y_true.astype(jnp.int32).reshape(1, n)        # (1, N)

    # Pad only to a 128-lane multiple (<= 127 samples); pad labels with -1.
    m = pl.cdiv(n, 128)
    n_pad = m * 128
    if n_pad != n:
        x = jnp.pad(x, ((0, 0), (0, n_pad - n)))
        y = jnp.pad(y, ((0, 0), (0, n_pad - n)), constant_values=-1)
    x = x.reshape(2, m, 128)                          # lane-dense class-major layout
    y = y.reshape(1, m, 128)

    # Row-tile size: multiple of 8 sublanes; default 4096 rows = 512K samples (~6 MiB
    # of input per grid step) so the per-step overhead is negligible.
    block_rows = max(8, (min(int(block_rows), 8192) // 8) * 8)
    tm = m if m <= block_rows else block_rows
    grid = (pl.cdiv(m, tm),)

    blk_bytes = tm * 128 * (2 * x.dtype.itemsize + 4)           # logits + labels / step
    vmem_limit = int(min(max(2 * blk_bytes + (2 << 20), 32 << 20), 56 << 20))

    out = pl.pallas_call(
        functools.partial(_f1_ce_kernel, epsilon=epsilon, n_true=n, m_rows=m),
        out_shape=jax.ShapeDtypeStruct((1, 1), jnp.float32),
        grid=grid,
        in_specs=[
            pl.BlockSpec((2, tm, 128), lambda i: (0, i, 0)),    # logits tile
            pl.BlockSpec((1, tm, 128), lambda i: (0, i, 0)),    # label tile
        ],
        out_specs=pl.BlockSpec((1, 1), lambda i: (0, 0)),
        scratch_shapes=[pltpu.VMEM((8, 128), jnp.float32)],     # single-vreg accumulator
        compiler_params=pltpu.CompilerParams(
            dimension_semantics=("arbitrary",),
            vmem_limit_bytes=vmem_limit,
        ),
    )(x, y)
    return out[0, 0]


def _reference(y_pred, y_true, epsilon=1e-7):
    """Pure-JAX reference mirroring the PyTorch module's forward pass."""
    one_hot = jax.nn.one_hot(y_true, 2, dtype=jnp.float32)
    y_pred = y_pred.astype(jnp.float32)
    tp = jnp.sum(one_hot * y_pred, axis=0)
    fp = jnp.sum((1 - one_hot) * y_pred, axis=0)
    fn = jnp.sum(one_hot * (1 - y_pred), axis=0)
    precision = tp / (tp + fp + epsilon)
    recall = tp / (tp + fn + epsilon)
    f1 = 2 * precision * recall / (precision + recall + epsilon)
    f1 = jnp.clip(f1, epsilon, 1 - epsilon)
    w = 1 - f1
    log_sm = jax.nn.log_softmax(y_pred, axis=1)
    per_sample = -jnp.sum(w[None, :] * one_hot * log_sm, axis=1)
    return jnp.mean(per_sample)


if __name__ == "__main__":
    key = jax.random.PRNGKey(0)
    k1, k2, k3, k4, k5, k6 = jax.random.split(key, 6)

    # Case 1: small batch, single tile, N a multiple of 128.
    n1 = 128
    y_pred1 = jax.random.normal(k1, (n1, 2), dtype=jnp.float32)
    y_true1 = jax.random.randint(k2, (n1,), 0, 2, dtype=jnp.int32)
    loss1 = jax.block_until_ready(f1_ce_loss(y_pred1, y_true1))
    ref1 = jax.block_until_ready(_reference(y_pred1, y_true1))
    assert jnp.allclose(loss1, ref1, rtol=1e-5, atol=1e-5), (loss1, ref1)

    # Case 2: multi-tile streaming (grid > 1), lane padding (1400 -> 1408) and a
    # partial last row-block (m=11 rows, tm=8) -> exercises the in-kernel OOB mask.
    n2 = 1400
    y_pred2 = jax.random.normal(k3, (n2, 2), dtype=jnp.float32)
    y_true2 = jax.random.randint(k4, (n2,), 0, 2, dtype=jnp.int32)
    loss2 = jax.block_until_ready(f1_ce_loss(y_pred2, y_true2, block_rows=8))
    ref2 = jax.block_until_ready(_reference(y_pred2, y_true2))
    assert jnp.allclose(loss2, ref2, rtol=1e-5, atol=1e-5), (loss2, ref2)

    # Case 3: bf16 logits passed straight through (compute stays f32 in-kernel).
    n3 = 300
    y_pred3 = jax.random.normal(k5, (n3, 2), dtype=jnp.bfloat16)
    y_true3 = jax.random.randint(k6, (n3,), 0, 2, dtype=jnp.int32)
    loss3 = jax.block_until_ready(f1_ce_loss(y_pred3, y_true3))
    ref3 = jax.block_until_ready(_reference(y_pred3, y_true3))
    assert jnp.allclose(loss3, ref3, rtol=2e-2, atol=2e-2), (loss3, ref3)

    print("KERNEL_OK")
</pallas_src>

<mosaic_0001>
module attributes {stable_mosaic.version = 11 : i64} {
  func.func @_f1_ce_kernel(%arg0: i32, %arg1: memref<2x1x128xf32, #tpu.memory_space<vmem>>, %arg2: memref<1x1x128xi32, #tpu.memory_space<vmem>>, %arg3: memref<1x1xf32, #tpu.memory_space<vmem>>, %arg4: memref<8x128xf32, #tpu.memory_space<vmem>>) attributes {dimension_semantics = [#tpu.dimension_semantics<arbitrary>], iteration_bounds = array<i64: 1>, scalar_prefetch = 0 : i64, scratch_operands = 1 : i64, tpu.core_type = #tpu.core_type<tc>, window_params = [{transform_indices = @transform_0, window_bounds = array<i64: 2, 1, 128>}, {transform_indices = @transform_1, window_bounds = array<i64: 1, 1, 128>}, {pipeline_mode = #tpu.pipeline_mode<synchronous>, transform_indices = @transform_2, window_bounds = array<i64: 1, 1>}]} {
    %c0_i32 = arith.constant 0 : i32
    %0 = arith.cmpi eq, %arg0, %c0_i32 : i32
    %1 = arith.extui %0 : i1 to i32
    %c0_i32_0 = arith.constant 0 : i32
    %2 = arith.cmpi ne, %1, %c0_i32_0 : i32
    scf.if %2 {
      %cst_34 = arith.constant 0.000000e+00 : f32
      %72 = vector.broadcast %cst_34 : f32 to vector<8x128xf32>
      %c0_35 = arith.constant 0 : index
      %c0_36 = arith.constant 0 : index
      %73 = vector.load %arg4[%c0_35, %c0_36] : memref<8x128xf32, #tpu.memory_space<vmem>>, vector<8x128xf32>
      tpu.vector_store %arg4[%c0_35, %c0_36], %72 {strides = array<i32>} : memref<8x128xf32, #tpu.memory_space<vmem>>, vector<8x128xf32>,
    } else {
    }
    %c0 = arith.constant 0 : index
    %c0_1 = arith.constant 0 : index
    %c0_2 = arith.constant 0 : index
    %3 = vector.load %arg1[%c0, %c0_1, %c0_2] : memref<2x1x128xf32, #tpu.memory_space<vmem>>, vector<1x1x128xf32>
    %4 = vector.shape_cast %3 : vector<1x1x128xf32> to vector<1x128xf32>
    %c1 = arith.constant 1 : index
    %c0_3 = arith.constant 0 : index
    %c0_4 = arith.constant 0 : index
    %5 = vector.load %arg1[%c1, %c0_3, %c0_4] : memref<2x1x128xf32, #tpu.memory_space<vmem>>, vector<1x1x128xf32>
    %6 = vector.shape_cast %5 : vector<1x1x128xf32> to vector<1x128xf32>
    %c0_5 = arith.constant 0 : index
    %c0_6 = arith.constant 0 : index
    %c0_7 = arith.constant 0 : index
    %7 = vector.load %arg2[%c0_5, %c0_6, %c0_7] : memref<1x1x128xi32, #tpu.memory_space<vmem>>, vector<1x1x128xi32>
    %8 = vector.shape_cast %7 : vector<1x1x128xi32> to vector<1x128xi32>
    %9 = tpu.iota {dimensions = array<i32: 0>} : vector<1x128xi32>
    %c1_i32 = arith.constant 1 : i32
    %10 = arith.muli %arg0, %c1_i32 : i32
    %11 = vector.broadcast %10 : i32 to vector<1x128xi32>
    %12 = arith.addi %11, %9 : vector<1x128xi32>
    %c1_i32_8 = arith.constant 1 : i32
    %13 = vector.broadcast %c1_i32_8 : i32 to vector<1x128xi32>
    %14 = arith.cmpi slt, %12, %13 : vector<1x128xi32>
    %cst = arith.constant 0.000000e+00 : f32
    %15 = vector.broadcast %cst : f32 to vector<1x128xf32>
    %16 = arith.select %14, %4, %15 : vector<1x128xi1>, vector<1x128xf32>
    %cst_9 = arith.constant 0.000000e+00 : f32
    %17 = vector.broadcast %cst_9 : f32 to vector<1x128xf32>
    %18 = arith.select %14, %6, %17 : vector<1x128xi1>, vector<1x128xf32>
    %c0_i32_10 = arith.constant 0 : i32
    %19 = vector.broadcast %c0_i32_10 : i32 to vector<1x128xi32>
    %20 = arith.cmpi eq, %8, %19 : vector<1x128xi32>
    %21 = arith.andi %14, %20 : vector<1x128xi1>
    %cst_11 = arith.constant 1.000000e+00 : f32
    %cst_12 = arith.constant 0.000000e+00 : f32
    %22 = vector.broadcast %cst_11 : f32 to vector<1x128xf32>
    %23 = vector.broadcast %cst_12 : f32 to vector<1x128xf32>
    %24 = arith.select %21, %22, %23 : vector<1x128xi1>, vector<1x128xf32>
    %c1_i32_13 = arith.constant 1 : i32
    %25 = vector.broadcast %c1_i32_13 : i32 to vector<1x128xi32>
    %26 = arith.cmpi eq, %8, %25 : vector<1x128xi32>
    %27 = arith.andi %14, %26 : vector<1x128xi1>
    %cst_14 = arith.constant 1.000000e+00 : f32
    %cst_15 = arith.constant 0.000000e+00 : f32
    %28 = vector.broadcast %cst_14 : f32 to vector<1x128xf32>
    %29 = vector.broadcast %cst_15 : f32 to vector<1x128xf32>
    %30 = arith.select %27, %28, %29 : vector<1x128xi1>, vector<1x128xf32>
    %31 = arith.subf %18, %16 : vector<1x128xf32>
    %c0_i32_16 = arith.constant 0 : i32
    %32 = vector.broadcast %c0_i32_16 : i32 to vector<1x128xi32>
    %33 = arith.cmpi eq, %8, %32 : vector<1x128xi32>
    %cst_17 = arith.constant 0.000000e+00 : f32
    %34 = vector.broadcast %cst_17 : f32 to vector<1x128xf32>
    %35 = arith.subf %34, %31 : vector<1x128xf32>
    %36 = arith.select %33, %31, %35 : vector<1x128xi1>, vector<1x128xf32>
    %cst_18 = arith.constant 0.000000e+00 : f32
    %37 = vector.broadcast %cst_18 : f32 to vector<1x128xf32>
    %38 = arith.maximumf %36, %37 : vector<1x128xf32>
    %39 = math.absf %36 : vector<1x128xf32>
    %cst_19 = arith.constant 0.000000e+00 : f32
    %40 = vector.broadcast %cst_19 : f32 to vector<1x128xf32>
    %41 = arith.subf %40, %39 : vector<1x128xf32>
    %42 = math.exp %41 : vector<1x128xf32>
    %43 = math.log1p %42 : vector<1x128xf32>
    %44 = arith.addf %38, %43 : vector<1x128xf32>
    %45 = arith.mulf %24, %16 : vector<1x128xf32>
    %cst_20 = arith.constant dense<0.000000e+00> : vector<128xf32>
    %46 = vector.multi_reduction <add>, %45, %cst_20 [0] : vector<1x128xf32> to vector<128xf32>
    %47 = vector.shape_cast %46 : vector<128xf32> to vector<1x128xf32>
    %48 = arith.mulf %30, %18 : vector<1x128xf32>
    %cst_21 = arith.constant dense<0.000000e+00> : vector<128xf32>
    %49 = vector.multi_reduction <add>, %48, %cst_21 [0] : vector<1x128xf32> to vector<128xf32>
    %50 = vector.shape_cast %49 : vector<128xf32> to vector<1x128xf32>
    %cst_22 = arith.constant dense<0.000000e+00> : vector<128xf32>
    %51 = vector.multi_reduction <add>, %16, %cst_22 [0] : vector<1x128xf32> to vector<128xf32>
    %52 = vector.shape_cast %51 : vector<128xf32> to vector<1x128xf32>
    %cst_23 = arith.constant dense<0.000000e+00> : vector<128xf32>
    %53 = vector.multi_reduction <add>, %18, %cst_23 [0] : vector<1x128xf32> to vector<128xf32>
    %54 = vector.shape_cast %53 : vector<128xf32> to vector<1x128xf32>
    %cst_24 = arith.constant dense<0.000000e+00> : vector<128xf32>
    %55 = vector.multi_reduction <add>, %24, %cst_24 [0] : vector<1x128xf32> to vector<128xf32>
    %56 = vector.shape_cast %55 : vector<128xf32> to vector<1x128xf32>
    %cst_25 = arith.constant dense<0.000000e+00> : vector<128xf32>
    %57 = vector.multi_reduction <add>, %30, %cst_25 [0] : vector<1x128xf32> to vector<128xf32>
    %58 = vector.shape_cast %57 : vector<128xf32> to vector<1x128xf32>
    %59 = arith.mulf %24, %44 : vector<1x128xf32>
    %cst_26 = arith.constant dense<0.000000e+00> : vector<128xf32>
    %60 = vector.multi_reduction <add>, %59, %cst_26 [0] : vector<1x128xf32> to vector<128xf32>
    %61 = vector.shape_cast %60 : vector<128xf32> to vector<1x128xf32>
    %62 = arith.mulf %30, %44 : vector<1x128xf32>
    %cst_27 = arith.constant dense<0.000000e+00> : vector<128xf32>
    %63 = vector.multi_reduction <add>, %62, %cst_27 [0] : vector<1x128xf32> to vector<128xf32>
    %64 = vector.shape_cast %63 : vector<128xf32> to vector<1x128xf32>
    %65 = tpu.concatenate %47, %50, %52, %54, %56, %58, %61, %64 in 0 : vector<1x128xf32>, vector<1x128xf32>, vector<1x128xf32>, vector<1x128xf32>, vector<1x128xf32>, vector<1x128xf32>, vector<1x128xf32>, vector<1x128xf32> -> vector<8x128xf32>
    %c0_28 = arith.constant 0 : index
    %c0_29 = arith.constant 0 : index
    %66 = vector.load %arg4[%c0_28, %c0_29] : memref<8x128xf32, #tpu.memory_space<vmem>>, vector<8x128xf32>
    %67 = arith.addf %66, %65 : vector<8x128xf32>
    %c0_30 = arith.constant 0 : index
    %c0_31 = arith.constant 0 : index
    %68 = vector.load %arg4[%c0_30, %c0_31] : memref<8x128xf32, #tpu.memory_space<vmem>>, vector<8x128xf32>
    tpu.vector_store %arg4[%c0_30, %c0_31], %67 {strides = array<i32>} : memref<8x128xf32, #tpu.memory_space<vmem>>, vector<8x128xf32>,
    %c0_i32_32 = arith.constant 0 : i32
    %69 = arith.cmpi eq, %arg0, %c0_i32_32 : i32
    %70 = arith.extui %69 : i1 to i32
    %c0_i32_33 = arith.constant 0 : i32
    %71 = arith.cmpi ne, %70, %c0_i32_33 : i32
    scf.if %71 {
      %c0_34 = arith.constant 0 : index
      %c0_35 = arith.constant 0 : index
      %72 = vector.load %arg4[%c0_34, %c0_35] : memref<8x128xf32, #tpu.memory_space<vmem>>, vector<8x128xf32>
      %cst_36 = arith.constant dense<0.000000e+00> : vector<8xf32>
      %73 = vector.multi_reduction <add>, %72, %cst_36 [1] : vector<8x128xf32> to vector<8xf32>
      %74 = vector.shape_cast %73 : vector<8xf32> to vector<8x1xf32>
      %75 = vector.extract_strided_slice %74 {offsets = [0, 0], sizes = [2, 1], strides = [1, 1]} : vector<8x1xf32> to vector<2x1xf32>
      %76 = vector.extract_strided_slice %74 {offsets = [2, 0], sizes = [2, 1], strides = [1, 1]} : vector<8x1xf32> to vector<2x1xf32>
      %77 = vector.extract_strided_slice %74 {offsets = [4, 0], sizes = [2, 1], strides = [1, 1]} : vector<8x1xf32> to vector<2x1xf32>
      %78 = vector.extract_strided_slice %74 {offsets = [6, 0], sizes = [2, 1], strides = [1, 1]} : vector<8x1xf32> to vector<2x1xf32>
      %79 = arith.subf %76, %75 : vector<2x1xf32>
      %80 = arith.subf %77, %75 : vector<2x1xf32>
      %81 = arith.addf %75, %79 : vector<2x1xf32>
      %cst_37 = arith.constant 1.000000e-07 : f32
      %82 = vector.broadcast %cst_37 : f32 to vector<2x1xf32>
      %83 = arith.addf %81, %82 : vector<2x1xf32>
      %84 = arith.divf %75, %83 : vector<2x1xf32>
      %85 = arith.addf %75, %80 : vector<2x1xf32>
      %cst_38 = arith.constant 1.000000e-07 : f32
      %86 = vector.broadcast %cst_38 : f32 to vector<2x1xf32>
      %87 = arith.addf %85, %86 : vector<2x1xf32>
      %88 = arith.divf %75, %87 : vector<2x1xf32>
      %cst_39 = arith.constant 2.000000e+00 : f32
      %89 = vector.broadcast %cst_39 : f32 to vector<2x1xf32>
      %90 = arith.mulf %89, %84 : vector<2x1xf32>
      %91 = arith.mulf %90, %88 : vector<2x1xf32>
      %92 = arith.addf %84, %88 : vector<2x1xf32>
      %cst_40 = arith.constant 1.000000e-07 : f32
      %93 = vector.broadcast %cst_40 : f32 to vector<2x1xf32>
      %94 = arith.addf %92, %93 : vector<2x1xf32>
      %95 = arith.divf %91, %94 : vector<2x1xf32>
      %cst_41 = arith.constant 1.000000e+00 : f32
      %cst_42 = arith.constant 1.000000e-07 : f32
      %96 = arith.subf %cst_41, %cst_42 : f32
      %cst_43 = arith.constant 1.000000e-07 : f32
      %97 = vector.broadcast %cst_43 : f32 to vector<2x1xf32>
      %98 = arith.maximumf %97, %95 : vector<2x1xf32>
      %99 = vector.broadcast %96 : f32 to vector<2x1xf32>
      %100 = arith.minimumf %99, %98 : vector<2x1xf32>
      %cst_44 = arith.constant 1.000000e+00 : f32
      %101 = vector.broadcast %cst_44 : f32 to vector<2x1xf32>
      %102 = arith.subf %101, %100 : vector<2x1xf32>
      %103 = arith.mulf %102, %78 : vector<2x1xf32>
      %cst_45 = arith.constant dense<0.000000e+00> : vector<1xf32>
      %104 = vector.multi_reduction <add>, %103, %cst_45 [0] : vector<2x1xf32> to vector<1xf32>
      %105 = vector.shape_cast %104 : vector<1xf32> to vector<1x1xf32>
      %cst_46 = arith.constant 1.280000e+02 : f32
      %106 = vector.broadcast %cst_46 : f32 to vector<1x1xf32>
      %107 = arith.divf %105, %106 : vector<1x1xf32>
      %c0_47 = arith.constant 0 : index
      %c0_48 = arith.constant 0 : index
      %108 = vector.load %arg3[%c0_47, %c0_48] : memref<1x1xf32, #tpu.memory_space<vmem>>, vector<1x1xf32>
      tpu.vector_store %arg3[%c0_47, %c0_48], %107 {strides = array<i32>} : memref<1x1xf32, #tpu.memory_space<vmem>>, vector<1x1xf32>,
    } else {
    }
    return
  }
  func.func @transform_0(%arg0: i32) -> (i32, i32, i32) {
    %c0_i32 = arith.constant 0 : i32
    %c0_i32_0 = arith.constant 0 : i32
    %c0_i32_1 = arith.constant 0 : i32
    return %c0_i32, %arg0, %c0_i32_0 : i32, i32, i32
  }
  func.func @transform_1(%arg0: i32) -> (i32, i32, i32) {
    %c0_i32 = arith.constant 0 : i32
    %c0_i32_0 = arith.constant 0 : i32
    %c0_i32_1 = arith.constant 0 : i32
    return %c0_i32, %arg0, %c0_i32_0 : i32, i32, i32
  }
  func.func @transform_2(%arg0: i32) -> (i32, i32) {
    %c0_i32 = arith.constant 0 : i32
    %c0_i32_0 = arith.constant 0 : i32
    %c0_i32_1 = arith.constant 0 : i32
    return %c0_i32, %c0_i32_0 : i32, i32
  }
}

</mosaic_0001>

<llo_original>
// kernel: tpu_custom_call.1
$region0: #{tpu_custom_call.1}
  #allocation0 [shape = 'u32[]', space=smem, size = 0x4, offset = 0x4, fixed_abs, tag = 'smem constant byte address 0x4 - core index']
  #allocation1 [shape = 'u32[144,128]{1,0:T(1,128)}', space=vmem, size = 0x12000, scoped, tag = 'internal scratch']
  #allocation2 [shape = 'f32[8,128]{1,0:T(8,128)}', space=vmem, size = 0x1000, scoped, tag = 'scratch operand']
  %s0 = inlined_call_operand.hbm [shape: f32[2,1,128], index: 0, kind: input, shape index: {}]
  %s1 = inlined_call_operand.vmem [shape: s32[1,1,128], index: 1, kind: input, shape index: {}]
  %s2 = inlined_call_operand.hbm [shape: f32[1,1], index: 2, kind: output, shape index: {}]
  %s3 = sld [smem:[#allocation0]]
  $region30: #{tpu_custom_call.1} parent=0
    _
  %s5 = ssub.s32 1, %s3
  %s6 = scalar_select 0, %s5, %s3
  $region1: #{tpu_custom_call.1} parent=0
    #allocation3 [shape = 'u8[1024]{0}', space=vmem, size = 0x400, scoped, tag = 'input window, operand 0, single buffered']
    #allocation4 [shape = 's32[1]{0}', space=sflag, size = 0x4, scoped, tag = 'scoped memory for tpu_custom_call.1']
    #allocation5 [shape = 's32[1]{0}', space=sflag, size = 0x4, scoped, tag = 'scoped memory for tpu_custom_call.1']
    #allocation6 [shape = 'u8[512]{0}', space=vmem, size = 0x400, scoped, tag = 'output window, operand 0, single buffered']
    %7 = vsyncpa [#allocation4], 0
    %8 = vsyncpa [#allocation5], 0
    // Predicated region
    $region2: #{tpu_custom_call.1} parent=1 // pred_check
      _
    $region3: #{tpu_custom_call.1} parent=1 // pred_check_branch
      %10 = sbr.rel (0) target = $region5
    $region4: #{tpu_custom_call.1} parent=1 // pred_region
      %s12 = ssub.s32 32, 32
      %13 = vsyncadd [#allocation4], %s12
      %s14 = sshll.u32 [#allocation3], 4
      %s15 = int_to_ptr.vmem [resolvable:$true] %s14
      %20 = dma.hbm_to_vmem [thread:$0]  %s0, 32, %s15, [#allocation4], 16, 16, 1
    $region5: #{tpu_custom_call.1} parent=1 // pred_fallthru
      _
    // Predicated region
    $region6: #{tpu_custom_call.1} parent=1 // pred_check
      _
    $region7: #{tpu_custom_call.1} parent=1 // pred_check_branch
      %22 = sbr.rel (0) target = $region9
    $region8: #{tpu_custom_call.1} parent=1 // pred_region
      _
    $region9: #{tpu_custom_call.1} parent=1 // pred_fallthru
      _
    // Predicated region
    $region10: #{tpu_custom_call.1} parent=1 // pred_check
      _
    $region11: #{tpu_custom_call.1} parent=1 // pred_check_branch
      %24 = sbr.rel (0) target = $region13
    $region12: #{tpu_custom_call.1} parent=1 // pred_region
      %25 = dma.done [#allocation4], 32
    $region13: #{tpu_custom_call.1} parent=1 // pred_fallthru
      _
    %p26 = scmp.eq.s32.totalorder 0, 0
    // Predicated region
    $region14: #{tpu_custom_call.1} parent=1 // pred_check
      %p27 = pneg %p26
    $region15: #{tpu_custom_call.1} parent=1 // pred_check_branch
      %29 = sbr.rel (%p27) target = $region17
    $region16: #{tpu_custom_call.1} parent=1 // pred_region
      %30 = vst [vmem:[#allocation2] sm:$0xff] 0.0
    $region17: #{tpu_custom_call.1} parent=1 // pred_fallthru
      _
    %v31 = vld [vmem:[#allocation3] sm:$0x1]
    %s32 = scalar_lea.vmem [#allocation3], 1
    %v33 = vld [vmem:[%s32] sm:$0x1]
    %v34 = vld [vmem:[%s1] sm:$0x1]
    %v35 = vlaneseq
    %v36 = vshrl.u32 %v35, 7
    %v37 = vstv 0
    %v38 = vadd.s32 %v37, %v36
    %vm39 = vcmp.lt.s32.totalorder %v38, 1
    %v40 = vsel %vm39, %v31, 0.0
    %v41 = vsel %vm39, %v33, 0.0
    %vm42 = vcmp.eq.s32.totalorder %v34, 0
    %vm43 = vmand %vm39, %vm42
    %v44 = vsel %vm43, 1.0, 0.0
    %vm45 = vcmp.eq.s32.totalorder %v34, 1
    %vm46 = vmand %vm39, %vm45
    %v47 = vsel %vm46, 1.0, 0.0
    %v48 = vsub.f32 %v41, %v40
    %v49 = vsub.f32 0.0, %v48
    %v50 = vsel %vm42, %v48, %v49
    %v51 = vmax.f32 %v50, 0.0
    %v52 = vand.u32 2147483647, %v50
    %v53 = vsub.f32 0.0, %v52
    %v54 = vmul.f32 %v53, 1.442695
    %v55 = vpow.pop %v54
    %v56 = vadd.f32 %v55, 1.0
    %v57 = vlog2.pop %v56
    %v58 = vmul.f32 %v57, 0.6931472
    %v59 = vmul.f32 -0.5, %v55
    %v60 = vadd.f32 %v59, 1.0
    %v61 = vmul.f32 %v60, %v55
    %v62 = vand.u32 2147483647, %v55
    %vm63 = vcmp.lt.f32.partialorder %v62, 0.0004427343
    %v64 = vsel %vm63, %v61, %v58
    %v65 = vadd.f32 %v51, %v64
    %v66 = vmul.f32 %v44, %v40
    %v67 = vadd.f32 %v66, 0.0
    %v68 = vmul.f32 %v47, %v41
    %v69 = vadd.f32 %v68, 0.0
    %v70 = vadd.f32 %v40, 0.0
    %v71 = vadd.f32 %v41, 0.0
    %v72 = vadd.f32 %v44, 0.0
    %v73 = vadd.f32 %v47, 0.0
    %v74 = vmul.f32 %v44, %v65
    %v75 = vadd.f32 %v74, 0.0
    %v76 = vmul.f32 %v47, %v65
    %v77 = vadd.f32 %v76, 0.0
    %v79 = vrot.slane %v69, 7
    %v82 = vrot.slane %v70, 6
    %v85 = vrot.slane %v71, 5
    %v88 = vrot.slane %v72, 4
    %v91 = vrot.slane %v73, 3
    %v94 = vrot.slane %v75, 2
    %v97 = vrot.slane %v77, 1
    %vm99 = vcmask 1040384
    %v100 = vsel %vm99, %v67, %v79
    %vm101 = vcmask 1041408
    %v102 = vsel %vm101, %v100, %v82
    %vm103 = vcmask 1042432
    %v104 = vsel %vm103, %v102, %v85
    %vm105 = vcmask 1043456
    %v106 = vsel %vm105, %v104, %v88
    %vm107 = vcmask 1044480
    %v108 = vsel %vm107, %v106, %v91
    %vm109 = vcmask 1045504
    %v110 = vsel %vm109, %v108, %v94
    %vm111 = vcmask 1046528
    %v112 = vsel %vm111, %v110, %v97
    %v113 = vld [vmem:[#allocation2] sm:$0xff]
    %v114 = vadd.f32 %v113, %v112
    %115 = vst [vmem:[#allocation2] sm:$0xff] %v114
    // Predicated region
    $region18: #{tpu_custom_call.1} parent=1 // pred_check
      %p116 = pneg %p26
    $region19: #{tpu_custom_call.1} parent=1 // pred_check_branch
      %118 = sbr.rel (%p116) target = $region21
    $region20: #{tpu_custom_call.1} parent=1 // pred_region
      %v119 = vld [vmem:[#allocation2] sm:$0xff]
      %120 = vadd.xlane.f32.xlu0 %v119
      %v121 = vpop.xlane.xlu0 %120
      %v123 = vrot.slane %v121, 6
      %v125 = vsub.f32 %v121, %v123
      %v126 = vrot.slane %v121, 4
      %v128 = vsub.f32 %v121, %v126
      %v130 = vrot.slane %v125, 2
      %v132 = vadd.f32 %v121, %v130
      %v133 = vadd.f32 %v132, 1e-07
      %v134 = vrcp.pop %v133
      %v135 = vmul.f32 %v121, %v134
      %v137 = vrot.slane %v128, 4
      %v139 = vadd.f32 %v121, %v137
      %v140 = vadd.f32 %v139, 1e-07
      %v141 = vrcp.pop %v140
      %v142 = vmul.f32 %v121, %v141
      %v143 = vmul.f32 %v135, 2.0
      %v144 = vmul.f32 %v143, %v142
      %v145 = vadd.f32 %v135, %v142
      %v146 = vadd.f32 %v145, 1e-07
      %v147 = vrcp.pop %v146
      %v148 = vmul.f32 %v144, %v147
      %v149 = vmax.f32 %v148, 1e-07
      %v150 = vmin.f32 %v149, 0.9999999
      %v151 = vsub.f32 1.0, %v150
      %v152 = vmul.f32 %v151, %v123
      %vm153 = vcmask 1024
      %v154 = vsel %vm153, %v152, 0.0
      %v155 = vrot.slane %v154, 4
      %v156 = vadd.f32 %v154, %v155
      %v157 = vrot.slane %v156, 2
      %v158 = vadd.f32 %v156, %v157
      %v159 = vrot.slane %v158, 1
      %v160 = vadd.f32 %v158, %v159
      %v161 = vrcp.pop 128.0
      %v162 = vmul.f32 %v160, %v161
      %vm163 = vcmask 0
      %164 = vst.msk [vmem:[#allocation6] sm:$0x1] %vm163, %v162
    $region21: #{tpu_custom_call.1} parent=1 // pred_fallthru
      _
    // Predicated region
    $region22: #{tpu_custom_call.1} parent=1 // pred_check
      _
    $region23: #{tpu_custom_call.1} parent=1 // pred_check_branch
      %166 = sbr.rel (0) target = $region25
    $region24: #{tpu_custom_call.1} parent=1 // pred_region
      %s168 = ssub.s32 16, 16
      %169 = vsyncadd [#allocation5], %s168
      %s171 = sshll.u32 [#allocation6], 4
      %s172 = int_to_ptr.vmem [resolvable:$true] %s171
      %174 = dma.vmem_to_hbm [thread:$0]  %s172, 16, %s2, [#allocation5]
    $region25: #{tpu_custom_call.1} parent=1 // pred_fallthru
      _
    // Predicated region
    $region26: #{tpu_custom_call.1} parent=1 // pred_check
      _
    $region27: #{tpu_custom_call.1} parent=1 // pred_check_branch
      %176 = sbr.rel (0) target = $region29
    $region28: #{tpu_custom_call.1} parent=1 // pred_region
      %177 = dma.done [#allocation5], 16
    $region29: #{tpu_custom_call.1} parent=1 // pred_fallthru
      _
    %178 = vsyncpa [#allocation4], 1
    %179 = vsyncpa [#allocation5], 1

</llo_original>
